<compile_context>
chip_gen: v5e
topology: v5e:2x2
jax: 0.10.0
libtpu: 0.0.40
codegen_flags: <defaults>
</compile_context>

<pallas_src>
import functools
import math

import jax
import jax.numpy as jnp
from jax import lax
from jax.experimental import pallas as pl
from jax.experimental.pallas import tpu as pltpu


# ------------------------------ sizing helpers -------------------------------

def _round_up(x, m):
    return (x + m - 1) // m * m


def _fit_tile(total, target, unit):
    """Largest divisor of `total` that is a multiple of `unit` and <= target.

    `total` must be a multiple of `unit` and `target` a power-of-two multiple
    of `unit`, so gcd(total, target) is always a valid tile.
    """
    if total <= target:
        return total
    return math.gcd(total, target)


def _vmem_capacity_bytes():
    try:
        cap = getattr(pltpu.get_tpu_info(), "vmem_capacity_bytes", None)
        if cap:
            return int(cap)
    except Exception:
        pass
    return 64 * 1024 * 1024          # conservative: v7x per-TensorCore VMEM


def _vmem_limit_bytes(need_bytes, cap_bytes):
    want = need_bytes + (16 << 20)                      # pipeline + compiler headroom
    ceiling = max(cap_bytes - (8 << 20), 32 << 20)      # leave physical headroom
    return int(min(max(want, 32 << 20), ceiling))


def _choose_proj_tiles(mp, hin_p, hp, budget):
    """Row tile tm (mult of 8) and output tile tn (mult of 128) within budget."""
    last = None
    for tm_t in (512, 256, 128, 8):
        for tn_t in (1024, 512, 256, 128):
            tm = _fit_tile(mp, tm_t, 8)
            tn = _fit_tile(hp, tn_t, 128)
            need = (2 * tm * hin_p * 2        # x block, double-buffered bf16
                    + 2 * hin_p * tn * 2      # weight block, double-buffered bf16
                    + 2 * tn * 4              # bias block
                    + 2 * tm * tn * 2         # output block, double-buffered bf16
                    + tm * tn * 4)            # f32 matmul result
            last = (tm, tn)
            if need <= budget:
                return tm, tn
    return last


def _choose_attn_tiles(sp, hp, out_bytes, budget):
    """q tile / kv tile (mults of 128 dividing Sp) within the VMEM budget."""
    if sp <= 128:
        return sp, sp
    last = None
    for tq_t in (512, 256, 128):              # bigger tq => fewer K/V re-streams
        for tk_t in (1024, 512, 256, 128):
            tq = _fit_tile(sp, tq_t, 128)
            tk = _fit_tile(sp, tk_t, 128)
            need = (2 * tq * hp * 2           # q block, double-buffered bf16
                    + 4 * tk * hp * 2         # k + v blocks, double-buffered bf16
                    + 2 * tq * hp * out_bytes # output block, double-buffered
                    + tq * hp * 4             # f32 accumulator scratch
                    + 8 * tq                  # m/l scratch
                    + 2 * tq * tk * 4)        # f32 score / prob temporaries
            last = (tq, tk)
            if need <= budget:
                return tq, tk
    return last


# --------------------------- fused Q/K/V projection ---------------------------

def _qkv_proj_kernel(x_ref, w_ref, b_ref, o_ref):
    # x: (tm, Hin_p) bf16; w: (1, Hin_p, tn) bf16; b: (1, 1, tn) f32; o: (1, tm, tn)
    acc = jnp.dot(x_ref[...], w_ref[0], preferred_element_type=jnp.float32)
    o_ref[0] = (acc + b_ref[0]).astype(o_ref.dtype)


def _qkv_projection(x2d, w_stacked, b_stacked, *, budget, cap):
    mp, hin_p = x2d.shape
    _, _, hp = w_stacked.shape
    tm, tn = _choose_proj_tiles(mp, hin_p, hp, budget)

    need = (2 * tm * hin_p * 2 + 2 * hin_p * tn * 2 + 2 * tn * 4
            + 2 * tm * tn * 2 + tm * tn * 4)

    # Grid (g, j, i): innermost i streams activation rows against a weight
    # block that stays resident (its block index is constant over i, so Pallas
    # does not re-DMA it per step).
    grid = (3, hp // tn, mp // tm)

    return pl.pallas_call(
        _qkv_proj_kernel,
        out_shape=jax.ShapeDtypeStruct((3, mp, hp), jnp.bfloat16),
        grid_spec=pltpu.PrefetchScalarGridSpec(
            num_scalar_prefetch=0,
            grid=grid,
            in_specs=[
                pl.BlockSpec((tm, hin_p), lambda g, j, i: (i, 0)),        # x rows
                pl.BlockSpec((1, hin_p, tn), lambda g, j, i: (g, 0, j)),  # weights
                pl.BlockSpec((1, 1, tn), lambda g, j, i: (g, 0, j)),      # bias
            ],
            out_specs=pl.BlockSpec((1, tm, tn), lambda g, j, i: (g, i, j)),
        ),
        compiler_params=pltpu.CompilerParams(
            dimension_semantics=("parallel", "parallel", "parallel"),
            vmem_limit_bytes=_vmem_limit_bytes(need, cap),
        ),
    )(x2d, w_stacked, b_stacked)


# ----------------- flash-style attention with online softmax ------------------

def _attention_kernel(q_ref, k_ref, v_ref, o_ref, m_sc, l_sc, acc_sc,
                      *, seq_len, kv_tile, needs_mask):
    ki = pl.program_id(2)

    @pl.when(ki == 0)
    def _():
        m_sc[...] = jnp.full_like(m_sc, -jnp.inf)
        l_sc[...] = jnp.zeros_like(l_sc)
        acc_sc[...] = jnp.zeros_like(acc_sc)

    q = q_ref[0]                                      # (tq, Hp) bf16, pre-scaled
    k = k_ref[0]                                      # (tk, Hp) bf16
    # scores = q @ k^T without an XLU transpose: contract the last dims.
    s = lax.dot_general(q, k, (((1,), (1,)), ((), ())),
                        preferred_element_type=jnp.float32)           # (tq, tk)

    if needs_mask:
        # Padded key positions (sequence padding) must not enter the softmax.
        kv_pos = ki * kv_tile + lax.broadcasted_iota(jnp.int32, s.shape, 1)
        s = jnp.where(kv_pos < seq_len, s, jnp.float32(-1e30))

    m_prev = m_sc[...]
    m_new = jnp.maximum(m_prev, jnp.max(s, axis=-1, keepdims=True))
    alpha = jnp.exp(m_prev - m_new)
    p = jnp.exp(s - m_new)
    l_sc[...] = alpha * l_sc[...] + jnp.sum(p, axis=-1, keepdims=True)
    acc_sc[...] = alpha * acc_sc[...] + jnp.dot(
        p.astype(v_ref.dtype), v_ref[0], preferred_element_type=jnp.float32)
    m_sc[...] = m_new

    @pl.when(ki == pl.num_programs(2) - 1)
    def _():
        # Exact divide: epilogue runs once per q-tile, so it is essentially free.
        o_ref[0] = (acc_sc[...] / l_sc[...]).astype(o_ref.dtype)


def _attention(q, k, v, *, seq_len, out_dtype, budget, cap):
    b, sp, hp = q.shape
    out_bytes = jnp.dtype(out_dtype).itemsize
    tq, tk = _choose_attn_tiles(sp, hp, out_bytes, budget)
    needs_mask = sp != seq_len

    kernel = functools.partial(_attention_kernel, seq_len=seq_len,
                               kv_tile=tk, needs_mask=needs_mask)

    need = (2 * tq * hp * 2 + 4 * tk * hp * 2 + 2 * tq * hp * out_bytes
            + tq * hp * 4 + 8 * tq + 2 * tq * tk * 4)

    q_spec = pl.BlockSpec((1, tq, hp), lambda bi, qi, ki: (bi, qi, 0))
    kv_spec = pl.BlockSpec((1, tk, hp), lambda bi, qi, ki: (bi, ki, 0))
    o_spec = pl.BlockSpec((1, tq, hp), lambda bi, qi, ki: (bi, qi, 0))

    return pl.pallas_call(
        kernel,
        out_shape=jax.ShapeDtypeStruct((b, sp, hp), out_dtype),
        grid_spec=pltpu.PrefetchScalarGridSpec(
            num_scalar_prefetch=0,
            grid=(b, sp // tq, sp // tk),
            in_specs=[q_spec, kv_spec, kv_spec],
            out_specs=o_spec,
            scratch_shapes=[
                pltpu.VMEM((tq, 1), jnp.float32),     # running max
                pltpu.VMEM((tq, 1), jnp.float32),     # running denominator
                pltpu.VMEM((tq, hp), jnp.float32),    # running numerator
            ],
        ),
        compiler_params=pltpu.CompilerParams(
            dimension_semantics=("parallel", "parallel", "arbitrary"),
            vmem_limit_bytes=_vmem_limit_bytes(need, cap),
        ),
    )(q, k, v)


# --------------------------------- wrapper ------------------------------------

def self_attention(x, wq, wk, wv, bq, bk, bv):
    """x: (B, S, H). wq/wk/wv: (H, H) torch Linear layout (out, in). b*: (H,)."""
    b, s_len, h = x.shape
    out_dtype = x.dtype
    scale = 1.0 / (h ** 0.5)

    cap = _vmem_capacity_bytes()
    budget = max(int(cap * 0.4), 24 << 20)

    # Padded geometry: feature dim -> multiple of 128 (lane-dense / MXU-friendly),
    # sequence dim -> tile granularity (multiple of 8 small, 128 large).
    hp = _round_up(h, 128)
    s8 = _round_up(s_len, 8)
    sp = s8 if s8 <= 128 else _round_up(s_len, 128)
    mp = b * sp

    # One-time wrapper-side prep (never repeated inside the serial grid loop):
    #  * zero-pad x to (B, Sp, Hp) -- zero feature columns are exact,
    #  * transpose weights to (in, out), fold 1/sqrt(H) into Q, zero-pad to
    #    (Hp, Hp), stack to (3, Hp, Hp) so the projection grid axis selects Q/K/V,
    #  * cast MXU operands to bf16 once (accumulation stays f32).
    xf = x.astype(jnp.float32)
    x_p = jnp.zeros((b, sp, hp), jnp.float32).at[:, :s_len, :h].set(xf)
    x2d = x_p.reshape(mp, hp).astype(jnp.bfloat16)

    def prep_w(w, s=1.0):
        wt = (w.astype(jnp.float32).T * s)
        return jnp.zeros((hp, hp), jnp.float32).at[:h, :h].set(wt)

    def prep_b(bias, s=1.0):
        return jnp.zeros((1, hp), jnp.float32).at[0, :h].set(
            bias.astype(jnp.float32) * s)

    w_stacked = jnp.stack(
        [prep_w(wq, scale), prep_w(wk), prep_w(wv)]).astype(jnp.bfloat16)  # (3,Hp,Hp)
    b_stacked = jnp.stack(
        [prep_b(bq, scale), prep_b(bk), prep_b(bv)])                       # (3,1,Hp)

    qkv = _qkv_projection(x2d, w_stacked, b_stacked, budget=budget, cap=cap)
    q = qkv[0].reshape(b, sp, hp)
    k = qkv[1].reshape(b, sp, hp)
    v = qkv[2].reshape(b, sp, hp)

    out_p = _attention(q, k, v, seq_len=s_len, out_dtype=out_dtype,
                       budget=budget, cap=cap)
    return out_p[:, :s_len, :h]


# -------------------------------- reference ------------------------------------

def _reference(x, wq, wk, wv, bq, bk, bv):
    q = jnp.einsum("bsh,oh->bso", x, wq) + bq
    k = jnp.einsum("bsh,oh->bso", x, wk) + bk
    v = jnp.einsum("bsh,oh->bso", x, wv) + bv
    h = x.shape[-1]
    scores = jnp.einsum("bqh,bkh->bqk", q, k) / (h ** 0.5)
    attn = jax.nn.softmax(scores, axis=-1)
    return jnp.einsum("bqk,bkh->bqh", attn, v)


if __name__ == "__main__":
    B, S, H = 2, 8, 32
    key = jax.random.PRNGKey(0)
    kx, kq, kk, kv, kbq, kbk, kbv = jax.random.split(key, 7)

    x = jax.random.normal(kx, (B, S, H), dtype=jnp.float32)

    # Deterministic parameter init mimicking nn.Linear's uniform(-1/sqrt(H), 1/sqrt(H))
    bound = 1.0 / (H ** 0.5)
    wq = jax.random.uniform(kq, (H, H), jnp.float32, -bound, bound)
    wk = jax.random.uniform(kk, (H, H), jnp.float32, -bound, bound)
    wv = jax.random.uniform(kv, (H, H), jnp.float32, -bound, bound)
    bq = jax.random.uniform(kbq, (H,), jnp.float32, -bound, bound)
    bk = jax.random.uniform(kbk, (H,), jnp.float32, -bound, bound)
    bv = jax.random.uniform(kbv, (H,), jnp.float32, -bound, bound)

    out = jax.block_until_ready(self_attention(x, wq, wk, wv, bq, bk, bv))
    ref = _reference(x, wq, wk, wv, bq, bk, bv)

    assert out.shape == (B, S, H)
    assert out.dtype == x.dtype
    # bf16 MXU operands -> loosened tolerance vs f32 reference.
    assert jnp.allclose(out, ref, atol=2e-2, rtol=2e-2), "mismatch vs reference"

    print("KERNEL_OK")
</pallas_src>

<mosaic_0001>
module attributes {stable_mosaic.version = 11 : i64} {
  func.func @_qkv_proj_kernel(%arg0: i32, %arg1: i32, %arg2: i32, %arg3: memref<16x128xbf16, #tpu.memory_space<vmem>>, %arg4: memref<1x128x128xbf16, #tpu.memory_space<vmem>>, %arg5: memref<1x1x128xf32, #tpu.memory_space<vmem>>, %arg6: memref<1x16x128xbf16, #tpu.memory_space<vmem>>) attributes {dimension_semantics = [#tpu.dimension_semantics<parallel>, #tpu.dimension_semantics<parallel>, #tpu.dimension_semantics<parallel>], iteration_bounds = array<i64: 3, 1, 1>, scalar_prefetch = 0 : i64, scratch_operands = 0 : i64, tpu.core_type = #tpu.core_type<tc>, window_params = [{transform_indices = @transform_0, window_bounds = array<i64: 16, 128>}, {transform_indices = @transform_1, window_bounds = array<i64: 1, 128, 128>}, {transform_indices = @transform_2, window_bounds = array<i64: 1, 1, 128>}, {transform_indices = @transform_3, window_bounds = array<i64: 1, 16, 128>}]} {
    %c0 = arith.constant 0 : index
    %c0_0 = arith.constant 0 : index
    %0 = vector.load %arg3[%c0, %c0_0] : memref<16x128xbf16, #tpu.memory_space<vmem>>, vector<16x128xbf16>
    %c0_1 = arith.constant 0 : index
    %c0_2 = arith.constant 0 : index
    %c0_3 = arith.constant 0 : index
    %1 = vector.load %arg4[%c0_1, %c0_2, %c0_3] : memref<1x128x128xbf16, #tpu.memory_space<vmem>>, vector<1x128x128xbf16>
    %2 = vector.shape_cast %1 : vector<1x128x128xbf16> to vector<128x128xbf16>
    %cst = arith.constant dense<0.000000e+00> : vector<16x128xf32>
    %3 = tpu.matmul %0, %2, %cst {dimension_numbers = #tpu.dot_dimension_numbers<[1], [0], [0], [1], [0, 0, 1, 1], [], []>} : vector<16x128xbf16>, vector<128x128xbf16>, vector<16x128xf32> -> vector<16x128xf32>
    %c0_4 = arith.constant 0 : index
    %c0_5 = arith.constant 0 : index
    %c0_6 = arith.constant 0 : index
    %4 = vector.load %arg5[%c0_4, %c0_5, %c0_6] : memref<1x1x128xf32, #tpu.memory_space<vmem>>, vector<1x1x128xf32>
    %5 = vector.shape_cast %4 : vector<1x1x128xf32> to vector<1x128xf32>
    %6 = vector.broadcast %5 : vector<1x128xf32> to vector<16x128xf32>
    %7 = arith.addf %3, %6 : vector<16x128xf32>
    %8 = arith.truncf %7 : vector<16x128xf32> to vector<16x128xbf16>
    %c0_7 = arith.constant 0 : index
    %c0_8 = arith.constant 0 : index
    %c0_9 = arith.constant 0 : index
    %9 = vector.load %arg6[%c0_7, %c0_8, %c0_9] : memref<1x16x128xbf16, #tpu.memory_space<vmem>>, vector<1x16x128xbf16>
    %10 = vector.shape_cast %9 : vector<1x16x128xbf16> to vector<16x128xbf16>
    %11 = vector.shape_cast %8 : vector<16x128xbf16> to vector<1x16x128xbf16>
    tpu.vector_store %arg6[%c0_7, %c0_8, %c0_9], %11 {strides = array<i32>} : memref<1x16x128xbf16, #tpu.memory_space<vmem>>, vector<1x16x128xbf16>,
    return
  }
  func.func @transform_0(%arg0: i32, %arg1: i32, %arg2: i32) -> (i32, i32) {
    %c0_i32 = arith.constant 0 : i32
    %c0_i32_0 = arith.constant 0 : i32
    return %arg2, %c0_i32 : i32, i32
  }
  func.func @transform_1(%arg0: i32, %arg1: i32, %arg2: i32) -> (i32, i32, i32) {
    %c0_i32 = arith.constant 0 : i32
    %c0_i32_0 = arith.constant 0 : i32
    return %arg0, %c0_i32, %arg1 : i32, i32, i32
  }
  func.func @transform_2(%arg0: i32, %arg1: i32, %arg2: i32) -> (i32, i32, i32) {
    %c0_i32 = arith.constant 0 : i32
    %c0_i32_0 = arith.constant 0 : i32
    return %arg0, %c0_i32, %arg1 : i32, i32, i32
  }
  func.func @transform_3(%arg0: i32, %arg1: i32, %arg2: i32) -> (i32, i32, i32) {
    %c0_i32 = arith.constant 0 : i32
    return %arg0, %arg2, %arg1 : i32, i32, i32
  }
}

</mosaic_0001>

<llo_original>
// kernel: tpu_custom_call.1
$region0: #{tpu_custom_call.1}
  #allocation0 [shape = 'u32[]', space=smem, size = 0x4, offset = 0x4, fixed_abs, tag = 'smem constant byte address 0x4 - core index']
  #allocation1 [shape = 'u32[72,128]{1,0:T(1,128)}', space=vmem, size = 0x9000, scoped, tag = 'internal scratch']
  %s0 = inlined_call_operand.hbm [shape: bf16[16,128], index: 0, kind: input, shape index: {}]
  %s1 = inlined_call_operand.hbm [shape: bf16[3,128,128], index: 1, kind: input, shape index: {}]
  %s2 = inlined_call_operand.hbm [shape: f32[3,1,128], index: 2, kind: input, shape index: {}]
  %s3 = inlined_call_operand.hbm [shape: bf16[3,16,128], index: 3, kind: output, shape index: {}]
  %s4 = sld [smem:[#allocation0]]
  $region57: #{tpu_custom_call.1} parent=0
    _
  %s6 = ssub.s32 1, %s4
  %s7 = scalar_select 0, %s6, %s4
  $region1: #{tpu_custom_call.1} parent=0
    #allocation2 [shape = 'u8[4096]{0}', space=vmem, size = 0x1000, scoped, tag = 'input window, operand 0, single buffered']
    #allocation3 [shape = 's32[2]{0}', space=sflag, size = 0x8, scoped, tag = 'scoped memory for tpu_custom_call.1']
    #allocation4 [shape = 's32[2]{0}', space=sflag, size = 0x8, scoped, tag = 'scoped memory for tpu_custom_call.1']
    #allocation5 [shape = 'u8[65536]{0}', space=vmem, size = 0x10000, scoped, tag = 'input window, operand 1']
    #allocation6 [shape = 's32[2]{0}', space=sflag, size = 0x8, scoped, tag = 'scoped memory for tpu_custom_call.1']
    #allocation7 [shape = 'u8[1024]{0}', space=vmem, size = 0x400, scoped, tag = 'input window, operand 2']
    #allocation8 [shape = 'u8[8192]{0}', space=vmem, size = 0x2000, scoped, tag = 'output window, operand 0']
    %8 = vsyncpa [#allocation3], 0
    %9 = vsyncpa [#allocation6], 0
    %s10 = scalar_lea.sflag [#allocation6], 1
    %11 = vsyncpa %s10, 0
    %12 = vsyncpa [#allocation4], 0
    %s13 = scalar_lea.sflag [#allocation4], 1
    %14 = vsyncpa %s13, 0
    loop: start=0, step=1, limit=5
    $region2: #{tpu_custom_call.1} parent=1 // loop_pre_header
      _
    $region3: #{tpu_custom_call.1} parent=1 // loop_header
      %s16 = sphi 0, %s20
      %p17 = scmp.ge.s32.totalorder %s16, 5
      %s23 = sphi 0, %s42
      %s24 = sphi 0, %s38
      %s25 = sphi 0, %s34
      %s26 = sphi 0, %s23
      %s27 = sphi 0, %s24
      %s28 = sphi 0, %s25
      %s29 = sphi 0, %s26
      %s30 = sphi 0, %s27
      %s31 = sphi 0, %s28
      %s45 = sphi 0, %s47
      %s48 = sphi 0, %s45
      %s49 = sphi 0, %s48
      %s65 = sphi 0, %s49
      %s73 = sphi 0, %s75
      %s76 = sphi 0, %s73
      %s77 = sphi 0, %s76
      %s93 = sphi 0, %s77
      %s101 = sphi 0, %s103
      %s104 = sphi 0, %s101
      %s105 = sphi 0, %s104
      %s121 = sphi 0, %s105
      %s131 = sphi 0, %s133
      %s134 = sphi 0, %s131
      %s135 = sphi 0, %s134
      %s151 = sphi 0, %s135
    $region4: #{tpu_custom_call.1} parent=1 // loop_header_branch
      %19 = sbr.rel (%p17) target = $region8
    $region5: #{tpu_custom_call.1} parent=1 // loop_body
      %s21 = ssub.s32 %s16, 1
      %s22 = ssub.s32 %s16, 2
      %s32 = sadd.s32 1, %s25
      %p33 = scmp.ge.s32.totalorder %s32, 1
      %s34 = scalar_select %p33, 0, %s32
      %s35 = sadd.s32 1, %s24
      %s36 = scalar_select %p33, %s35, %s24
      %p37 = scmp.ge.s32.totalorder %s36, 1
      %s38 = scalar_select %p37, 0, %s36
      %s39 = sadd.s32 1, %s23
      %s40 = scalar_select %p37, %s39, %s23
      %p41 = scmp.ge.s32.totalorder %s40, 3
      %s42 = scalar_select %p41, 0, %s40
      %s43 = ssub.s32 %s25, %s34
      %p44 = scmp.eq.s32.totalorder %s43, 0
      %s46 = sadd.s32 %s45, 1
      %s47 = scalar_select %p44, %s45, %s46
      %p50 = pneg %p44
      %p51 = scmp.eq.s32.totalorder %s16, 2
      %p52 = por %p50, %p51
      %p53 = scmp.ne.s32.totalorder %s45, %s48
      %p54 = scmp.eq.s32.totalorder %s16, 0
      %p55 = por %p53, %p54
      %p56 = scmp.ne.s32.totalorder %s45, %s48
      %p57 = scmp.eq.s32.totalorder %s21, 2
      %p58 = por %p56, %p57
      %p59 = scmp.ne.s32.totalorder %s48, %s49
      %p60 = scmp.eq.s32.totalorder %s21, 0
      %p61 = por %p59, %p60
      %p62 = scmp.ne.s32.totalorder %s48, %s49
      %p63 = scmp.eq.s32.totalorder %s22, 2
      %p64 = por %p62, %p63
      %p66 = scmp.ne.s32.totalorder %s49, %s65
      %p67 = scmp.eq.s32.totalorder %s22, 0
      %p68 = por %p66, %p67
      %s69 = ssub.s32 %s23, %s42
      %s70 = ssub.s32 %s24, %s38
      %s71 = sor.u32 %s69, %s70
      %p72 = scmp.eq.s32.totalorder %s71, 0
      %s74 = sadd.s32 %s73, 1
      %s75 = scalar_select %p72, %s73, %s74
      %p78 = pneg %p72
      %p79 = scmp.eq.s32.totalorder %s16, 2
      %p80 = por %p78, %p79
      %p81 = scmp.ne.s32.totalorder %s73, %s76
      %p82 = scmp.eq.s32.totalorder %s16, 0
      %p83 = por %p81, %p82
      %p84 = scmp.ne.s32.totalorder %s73, %s76
      %p85 = scmp.eq.s32.totalorder %s21, 2
      %p86 = por %p84, %p85
      %p87 = scmp.ne.s32.totalorder %s76, %s77
      %p88 = scmp.eq.s32.totalorder %s21, 0
      %p89 = por %p87, %p88
      %p90 = scmp.ne.s32.totalorder %s76, %s77
      %p91 = scmp.eq.s32.totalorder %s22, 2
      %p92 = por %p90, %p91
      %p94 = scmp.ne.s32.totalorder %s77, %s93
      %p95 = scmp.eq.s32.totalorder %s22, 0
      %p96 = por %p94, %p95
      %s97 = ssub.s32 %s23, %s42
      %s98 = ssub.s32 %s24, %s38
      %s99 = sor.u32 %s97, %s98
      %p100 = scmp.eq.s32.totalorder %s99, 0
      %s102 = sadd.s32 %s101, 1
      %s103 = scalar_select %p100, %s101, %s102
      %p106 = pneg %p100
      %p107 = scmp.eq.s32.totalorder %s16, 2
      %p108 = por %p106, %p107
      %p109 = scmp.ne.s32.totalorder %s101, %s104
      %p110 = scmp.eq.s32.totalorder %s16, 0
      %p111 = por %p109, %p110
      %p112 = scmp.ne.s32.totalorder %s101, %s104
      %p113 = scmp.eq.s32.totalorder %s21, 2
      %p114 = por %p112, %p113
      %p115 = scmp.ne.s32.totalorder %s104, %s105
      %p116 = scmp.eq.s32.totalorder %s21, 0
      %p117 = por %p115, %p116
      %p118 = scmp.ne.s32.totalorder %s104, %s105
      %p119 = scmp.eq.s32.totalorder %s22, 2
      %p120 = por %p118, %p119
      %p122 = scmp.ne.s32.totalorder %s105, %s121
      %p123 = scmp.eq.s32.totalorder %s22, 0
      %p124 = por %p122, %p123
      %s125 = ssub.s32 %s23, %s42
      %s126 = ssub.s32 %s25, %s34
      %s127 = sor.u32 %s125, %s126
      %s128 = ssub.s32 %s24, %s38
      %s129 = sor.u32 %s127, %s128
      %p130 = scmp.eq.s32.totalorder %s129, 0
      %s132 = sadd.s32 %s131, 1
      %s133 = scalar_select %p130, %s131, %s132
      %p136 = pneg %p130
      %p137 = scmp.eq.s32.totalorder %s16, 2
      %p138 = por %p136, %p137
      %p139 = scmp.ne.s32.totalorder %s131, %s134
      %p140 = scmp.eq.s32.totalorder %s16, 0
      %p141 = por %p139, %p140
      %p142 = scmp.ne.s32.totalorder %s131, %s134
      %p143 = scmp.eq.s32.totalorder %s21, 2
      %p144 = por %p142, %p143
      %p145 = scmp.ne.s32.totalorder %s134, %s135
      %p146 = scmp.eq.s32.totalorder %s21, 0
      %p147 = por %p145, %p146
      %p148 = scmp.ne.s32.totalorder %s134, %s135
      %p149 = scmp.eq.s32.totalorder %s22, 2
      %p150 = por %p148, %p149
      %p152 = scmp.ne.s32.totalorder %s135, %s151
      %p153 = scmp.eq.s32.totalorder %s22, 0
      %p154 = por %p152, %p153
      %p155 = scmp.le.s32.totalorder 1, %s16
      %p156 = scmp.lt.s32.totalorder %s16, 4
      %p157 = pnand %p155, %p156
      %p158 = pneg %p157
      // Predicated region
      $region9: #{tpu_custom_call.1} parent=5 // pred_check
        _
      $region10: #{tpu_custom_call.1} parent=5 // pred_check_branch
        %160 = sbr.rel (%p157) target = $region12
      $region11: #{tpu_custom_call.1} parent=5 // pred_region
        %s161 = ssub.s32 %s16, 1
        // Predicated region
        $region13: #{tpu_custom_call.1} parent=11 // pred_check
          %p162 = pneg %p61
        $region14: #{tpu_custom_call.1} parent=11 // pred_check_branch
          %164 = sbr.rel (%p162) target = $region16
        $region15: #{tpu_custom_call.1} parent=11 // pred_region
          %s165 = smul.u32 2, %s28
          %167 = vsyncadd [#allocation3], 0
          %s168 = smul.addr %s165, 4
          %s169 = scalar_lea.hbm %s0, %s168
          %s170 = sshll.u32 %s169, 4
          %s171 = int_to_ptr.hbm [resolvable:$true] %s170
          %s172 = sshll.u32 [#allocation2], 4
          %s173 = int_to_ptr.vmem [resolvable:$true] %s172
          %178 = dma.hbm_to_vmem [thread:$0]  %s171, 128, %s173, [#allocation3], 64, 64, 4
        $region16: #{tpu_custom_call.1} parent=11 // pred_fallthru
          _
      $region12: #{tpu_custom_call.1} parent=5 // pred_fallthru
        _
      %p179 = scmp.lt.s32.totalorder %s16, 3
      // Predicated region
      $region17: #{tpu_custom_call.1} parent=5 // pred_check
        %p180 = pneg %p179
      $region18: #{tpu_custom_call.1} parent=5 // pred_check_branch
        %182 = sbr.rel (%p180) target = $region20
      $region19: #{tpu_custom_call.1} parent=5 // pred_region
        // Predicated region
        $region21: #{tpu_custom_call.1} parent=19 // pred_check
          %p183 = pneg %p83
        $region22: #{tpu_custom_call.1} parent=19 // pred_check_branch
          %185 = sbr.rel (%p183) target = $region24
        $region23: #{tpu_custom_call.1} parent=19 // pred_region
          %s186 = sand.u32 %s16, 1
          %s187 = scalar_lea.sflag [#allocation6], %s186
          %s188 = sand.u32 %s73, 1
          %s189 = smul.addr %s188, 64
          %s190 = scalar_lea.vmem [#allocation5], %s189
          %192 = vsyncadd %s187, 0
          %s193 = smul.addr %s23, 16
          %s194 = sadd.s32 %s24, %s193
          %s195 = smul.addr %s194, 4
          %s196 = scalar_lea.hbm %s1, %s195
          %s197 = sshll.u32 %s196, 4
          %s198 = int_to_ptr.hbm [resolvable:$true] %s197
          %s199 = sshll.u32 %s190, 4
          %s200 = int_to_ptr.vmem [resolvable:$true] %s199
          %205 = dma.hbm_to_vmem [thread:$0]  %s198, 1024, %s200, %s187, 64, 64, 4
        $region24: #{tpu_custom_call.1} parent=19 // pred_fallthru
          _
        // Predicated region
        $region25: #{tpu_custom_call.1} parent=19 // pred_check
          %p206 = pneg %p111
        $region26: #{tpu_custom_call.1} parent=19 // pred_check_branch
          %208 = sbr.rel (%p206) target = $region28
        $region27: #{tpu_custom_call.1} parent=19 // pred_region
          %s209 = sand.u32 %s16, 1
          %s210 = scalar_lea.sflag [#allocation6], %s209
          %s211 = sand.u32 %s101, 1
          %s212 = scalar_lea.vmem [#allocation7], %s211
          %214 = vsyncadd %s210, 0
          %s215 = sadd.s32 %s24, %s23
          %s216 = scalar_lea.hbm %s2, %s215
          %s218 = sshll.u32 %s216, 4
          %s219 = int_to_ptr.hbm [resolvable:$true] %s218
          %s220 = sshll.u32 %s212, 4
          %s221 = int_to_ptr.vmem [resolvable:$true] %s220
          %223 = dma.hbm_to_vmem [thread:$0]  %s219, 16, %s221, %s210
        $region28: #{tpu_custom_call.1} parent=19 // pred_fallthru
          _
      $region20: #{tpu_custom_call.1} parent=5 // pred_fallthru
        _
      %p224 = scmp.le.s32.totalorder 1, %s16
      %p225 = scmp.lt.s32.totalorder %s16, 4
      %p226 = pnand %p224, %p225
      %p227 = pneg %p226
      // Predicated region
      $region29: #{tpu_custom_call.1} parent=5 // pred_check
        _
      $region30: #{tpu_custom_call.1} parent=5 // pred_check_branch
        %229 = sbr.rel (%p226) target = $region32
      $region31: #{tpu_custom_call.1} parent=5 // pred_region
        %s230 = ssub.s32 %s16, 1
        // Predicated region
        $region33: #{tpu_custom_call.1} parent=31 // pred_check
          %p231 = pneg %p61
        $region34: #{tpu_custom_call.1} parent=31 // pred_check_branch
          %233 = sbr.rel (%p231) target = $region36
        $region35: #{tpu_custom_call.1} parent=31 // pred_region
          %235 = dma.done [#allocation3], 128
        $region36: #{tpu_custom_call.1} parent=31 // pred_fallthru
          _
        %s236 = sand.u32 %s21, 1
        %s237 = scalar_lea.sflag [#allocation6], %s236
        %s238 = sand.u32 %s76, 1
        %s239 = smul.addr %s238, 64
        %s240 = scalar_lea.vmem [#allocation5], %s239
        // Predicated region
        $region37: #{tpu_custom_call.1} parent=31 // pred_check
          %p241 = pneg %p89
        $region38: #{tpu_custom_call.1} parent=31 // pred_check_branch
          %243 = sbr.rel (%p241) target = $region40
        $region39: #{tpu_custom_call.1} parent=31 // pred_region
          %245 = dma.done %s237, 1024
        $region40: #{tpu_custom_call.1} parent=31 // pred_fallthru
          _
        %s246 = sand.u32 %s21, 1
        %s247 = scalar_lea.sflag [#allocation6], %s246
        %s248 = sand.u32 %s104, 1
        %s249 = scalar_lea.vmem [#allocation7], %s248
        // Predicated region
        $region41: #{tpu_custom_call.1} parent=31 // pred_check
          %p250 = pneg %p117
        $region42: #{tpu_custom_call.1} parent=31 // pred_check_branch
          %252 = sbr.rel (%p250) target = $region44
        $region43: #{tpu_custom_call.1} parent=31 // pred_region
          %254 = dma.done %s247, 16
        $region44: #{tpu_custom_call.1} parent=31 // pred_fallthru
          _
        %p255 = pneg %p61
        %p256 = pneg %p58
        %s257 = sand.u32 %s21, 1
        %s258 = scalar_lea.sflag [#allocation6], %s257
        %s259 = sand.u32 %s76, 1
        %s260 = smul.addr %s259, 64
        %s261 = scalar_lea.vmem [#allocation5], %s260
        %p262 = pneg %p89
        %p263 = pneg %p86
        %s264 = sand.u32 %s21, 1
        %s265 = scalar_lea.sflag [#allocation6], %s264
        %s266 = sand.u32 %s104, 1
        %s267 = scalar_lea.vmem [#allocation7], %s266
        %p268 = pneg %p117
        %p269 = pneg %p114
        %p270 = pneg %p147
        %p271 = pneg %p144
        %s272 = sand.u32 %s134, 1
        %s273 = scalar_lea.sflag [#allocation4], %s272
        %s274 = sand.u32 %s134, 1
        %s275 = smul.addr %s274, 8
        %s276 = scalar_lea.vmem [#allocation8], %s275
        %s277 = smul.u32 2, %s28
        %s278 = smul.u32 2, %s28
        %v279 = vld [vmem:[#allocation2] sm:$0xf]
        %v280 = vld [vmem:[#allocation2 + $0x4] sm:$0xf]
        %v281 = vld [vmem:[%s240] sm:$0xf]
        %v282 = vld [vmem:[%s240 + $0x4] sm:$0xf]
        %v283 = vld [vmem:[%s240 + $0x8] sm:$0xf]
        %v284 = vld [vmem:[%s240 + $0xc] sm:$0xf]
        %v285 = vld [vmem:[%s240 + $0x10] sm:$0xf]
        %v286 = vld [vmem:[%s240 + $0x14] sm:$0xf]
        %v287 = vld [vmem:[%s240 + $0x18] sm:$0xf]
        %v288 = vld [vmem:[%s240 + $0x1c] sm:$0xf]
        %v289 = vld [vmem:[%s240 + $0x20] sm:$0xf]
        %v290 = vld [vmem:[%s240 + $0x24] sm:$0xf]
        %v291 = vld [vmem:[%s240 + $0x28] sm:$0xf]
        %v292 = vld [vmem:[%s240 + $0x2c] sm:$0xf]
        %v293 = vld [vmem:[%s240 + $0x30] sm:$0xf]
        %v294 = vld [vmem:[%s240 + $0x34] sm:$0xf]
        %v295 = vld [vmem:[%s240 + $0x38] sm:$0xf]
        %v296 = vld [vmem:[%s240 + $0x3c] sm:$0xf]
        %v297 = vld [vmem:[%s249] sm:$0x1]
        %v299 = vperm.slane %v297, 0
        %v303 = vunpack.c.l.b16 %v279
        %v304 = vunpack.c.l.b16 %v280
        %v305 = vpack.c.b16 %v304, %v303
        %v323 = vunpack.c.l.b16 %v281
        %v324 = vunpack.c.l.b16 %v282
        %v325 = vunpack.c.l.b16 %v283
        %v326 = vunpack.c.l.b16 %v284
        %v327 = vunpack.c.l.b16 %v285
        %v328 = vunpack.c.l.b16 %v286
        %v329 = vunpack.c.l.b16 %v287
        %v330 = vunpack.c.l.b16 %v288
        %v331 = vunpack.c.l.b16 %v289
        %v332 = vunpack.c.l.b16 %v290
        %v333 = vunpack.c.l.b16 %v291
        %v334 = vunpack.c.l.b16 %v292
        %v335 = vunpack.c.l.b16 %v293
        %v336 = vunpack.c.l.b16 %v294
        %v337 = vunpack.c.l.b16 %v295
        %v338 = vunpack.c.l.b16 %v296
        %v339 = vpack.c.b16 %v324, %v323
        %v340 = vpack.c.b16 %v326, %v325
        %v341 = vpack.c.b16 %v328, %v327
        %v342 = vpack.c.b16 %v330, %v329
        %v343 = vpack.c.b16 %v332, %v331
        %v344 = vpack.c.b16 %v334, %v333
        %v345 = vpack.c.b16 %v336, %v335
        %v346 = vpack.c.b16 %v338, %v337
        %355 = vmatpush.bf16.msra.mxu0 %v346
        %356 = vmatpush.bf16.msra.mxu0 %v345
        %357 = vmatpush.bf16.msra.mxu0 %v344
        %358 = vmatpush.bf16.msra.mxu0 %v343
        %359 = vmatpush.bf16.msra.mxu0 %v342
        %360 = vmatpush.bf16.msra.mxu0 %v341
        %361 = vmatpush.bf16.msra.mxu0 %v340
        %362 = vmatpush.bf16.msra.mxu0 %v339
        %363 = vmatmul.bf16.gmra.mxu0 %v305
        %v364 = vpop.f32.mrf.mxu0
        %v365 = vadd.f32 %v299, %v364
        %v366 = vpop.f32.mrf.mxu0
        %v367 = vadd.f32 %v299, %v366
        %368 = vdwg.mxu0
        %v369 = vpack.c.bf16 %v365, %v365
        %v370 = vpack.c.bf16 %v367, %v367
        %371 = vst [vmem:[%s276] sm:$0xf] %v369
        %372 = vst [vmem:[%s276 + $0x4] sm:$0xf] %v370
        %s373 = sand.u32 %s134, 1
        %s374 = scalar_lea.sflag [#allocation4], %s373
        %s375 = sand.u32 %s134, 1
        %s376 = smul.addr %s375, 8
        %s377 = scalar_lea.vmem [#allocation8], %s376
        // Predicated region
        $region45: #{tpu_custom_call.1} parent=31 // pred_check
          %p378 = pneg %p144
        $region46: #{tpu_custom_call.1} parent=31 // pred_check_branch
          %380 = sbr.rel (%p378) target = $region48
        $region47: #{tpu_custom_call.1} parent=31 // pred_region
          %s381 = smul.u32 2, %s28
          %383 = vsyncadd %s374, 0
          %s384 = sadd.s32 %s27, %s381
          %s385 = smul.addr %s26, 2
          %s386 = sadd.s32 %s384, %s385
          %s387 = smul.addr %s386, 4
          %s388 = scalar_lea.hbm %s3, %s387
          %s389 = sshll.u32 %s377, 4
          %s390 = int_to_ptr.vmem [resolvable:$true] %s389
          %s391 = sshll.u32 %s388, 4
          %s392 = int_to_ptr.hbm [resolvable:$true] %s391
          %397 = dma.vmem_to_hbm [thread:$0]  %s390, 128, %s392, %s374, 64, 64, 4
        $region48: #{tpu_custom_call.1} parent=31 // pred_fallthru
          _
      $region32: #{tpu_custom_call.1} parent=5 // pred_fallthru
        _
      %p398 = scmp.le.s32.totalorder 2, %s16
      // Predicated region
      $region49: #{tpu_custom_call.1} parent=5 // pred_check
        %p399 = pneg %p398
      $region50: #{tpu_custom_call.1} parent=5 // pred_check_branch
        %401 = sbr.rel (%p399) target = $region52
      $region51: #{tpu_custom_call.1} parent=5 // pred_region
        %s402 = ssub.s32 %s16, 2
        // Predicated region
        $region53: #{tpu_custom_call.1} parent=51 // pred_check
          %p403 = pneg %p150
        $region54: #{tpu_custom_call.1} parent=51 // pred_check_branch
          %405 = sbr.rel (%p403) target = $region56
        $region55: #{tpu_custom_call.1} parent=51 // pred_region
          %s406 = sand.u32 %s135, 1
          %s407 = scalar_lea.sflag [#allocation4], %s406
          %s408 = sand.u32 %s135, 1
          %s409 = smul.addr %s408, 8
          %s410 = scalar_lea.vmem [#allocation8], %s409
          %412 = dma.done %s407, 128
        $region56: #{tpu_custom_call.1} parent=51 // pred_fallthru
          _
      $region52: #{tpu_custom_call.1} parent=5 // pred_fallthru
        _
    $region6: #{tpu_custom_call.1} parent=1 // loop_footer
      %s20 = sadd.s32 1, %s16
    $region7: #{tpu_custom_call.1} parent=1 // loop_footer_branch
      %15 = sbr.rel target = $region3
    $region8: #{tpu_custom_call.1} parent=1 // loop_exit
      _
    %413 = vsyncpa [#allocation3], 1
    %s414 = scalar_lea.sflag [#allocation3], 1
    %415 = vsyncpa %s414, 1
    %416 = vsyncpa [#allocation6], 1
    %s417 = scalar_lea.sflag [#allocation6], 1
    %418 = vsyncpa %s417, 1
    %419 = vsyncpa [#allocation4], 1
    %s420 = scalar_lea.sflag [#allocation4], 1
    %421 = vsyncpa %s420, 1

</llo_original>
